<compile_context>
chip_gen: v5e
topology: v5e:2x2
jax: 0.10.0
libtpu: 0.0.40
codegen_flags: <defaults>
</compile_context>

<pallas_src>
import jax
import jax.numpy as jnp
from jax.experimental import pallas as pl
from jax.experimental.pallas import tpu as pltpu

STATE_DIM = 4     # CartPole state
ACTION_DIM = 2    # discrete actions (one-hot in the PyTorch module)
HIDDEN = 128


def _termination_kernel(s_ref, n_ref, a_ref,
                        w1s_ref, w1n_ref, w1d_ref, b1_ref,
                        w2_ref, b2_ref, w3t_ref, b3_ref,
                        out_ref):
    # Layer 1: two K=4 MXU dots (no concat) + linear action term + folded bias.
    h = jnp.dot(s_ref[...], w1s_ref[...], preferred_element_type=jnp.float32)
    h = h + jnp.dot(n_ref[...], w1n_ref[...], preferred_element_type=jnp.float32)
    h = h + a_ref[...].astype(jnp.float32) * w1d_ref[...] + b1_ref[...]
    h = jnp.maximum(h, 0.0)                                        # ReLU

    # Layer 2: (TB,128) @ (128,64)
    h = jnp.dot(h, w2_ref[...], preferred_element_type=jnp.float32) + b2_ref[...]
    h = jnp.maximum(h, 0.0)                                        # ReLU

    # Layer 3, lane-dense: (1,64) . (TB,64)^T -> (1,TB)  (minor-minor contraction,
    # same pattern as q@k^T). Output block is fully lane-dense -> unmasked stores.
    logits = jax.lax.dot_general(
        w3t_ref[...], h, (((1,), (1,)), ((), ())),
        preferred_element_type=jnp.float32)                        # (1, TB)
    out_ref[...] = jax.nn.sigmoid(logits + b3_ref[...]).astype(out_ref.dtype)


def _round_up(n, m):
    return (n + m - 1) // m * m


def init_params(key, state_dim=STATE_DIM, action_dim=ACTION_DIM, hidden_dim=HIDDEN):
    """PyTorch-style (uniform +-1/sqrt(fan_in)) init; weights stored [in, out]."""
    dims = [(2 * state_dim + action_dim, hidden_dim),
            (hidden_dim, hidden_dim // 2),
            (hidden_dim // 2, 1)]
    params = {}
    ks = jax.random.split(key, 2 * len(dims))
    for i, (fan_in, fan_out) in enumerate(dims):
        bound = 1.0 / jnp.sqrt(float(fan_in))
        params[f"w{i+1}"] = jax.random.uniform(
            ks[2 * i], (fan_in, fan_out), jnp.float32, -bound, bound)
        params[f"b{i+1}"] = jax.random.uniform(
            ks[2 * i + 1], (1, fan_out), jnp.float32, -bound, bound)
    return params


def termination_predictor(state, action, next_state, params, *, block_b=4096):
    """state/next_state: (B, 4) f32, action: (B,) int in {0,1}. Returns (B, 1) f32."""
    B = state.shape[0]
    block_b = max(1024, _round_up(int(block_b), 128))   # keep blocks lane/sublane friendly
    TB = min(block_b, _round_up(B, 128))                # multiple of 128, no huge over-pad
    grid = pl.cdiv(B, TB)                               # partial tail block handled by Pallas
    n_out = _round_up(B, 128)                           # lane-dense flat output length

    a2 = action.reshape(B, 1).astype(jnp.int32)         # metadata-only reshape; cast is tiny

    # Split W1: rows [0:4]=state, [4:6]=action(one-hot), [6:10]=next_state.
    w1, b1 = params["w1"], params["b1"]
    w1_s = w1[:STATE_DIM]                                # (4, 128)
    w1_n = w1[STATE_DIM + ACTION_DIM:]                   # (4, 128)
    w1_a0 = w1[STATE_DIM:STATE_DIM + 1]                  # (1, 128)
    w1_a1 = w1[STATE_DIM + 1:STATE_DIM + ACTION_DIM]     # (1, 128)
    b1_eff = b1 + w1_a0                                  # fold action-0 row into bias
    w1_delta = w1_a1 - w1_a0                             # action==1 adds this row
    w3_t = params["w3"].T                                # (1, 64)

    weights = (w1_s, w1_n, w1_delta, b1_eff,
               params["w2"], params["b2"], w3_t, params["b3"])

    def stream(cols):                                    # streamed per-batch-block
        return pl.BlockSpec((TB, cols), lambda i: (i, 0))

    def resident(shape):                                 # DMA'd once, VMEM-resident
        return pl.BlockSpec(shape, lambda i: (0,) * len(shape))

    out = pl.pallas_call(
        _termination_kernel,
        out_shape=jax.ShapeDtypeStruct((1, n_out), state.dtype),
        grid=(grid,),
        in_specs=[stream(STATE_DIM), stream(STATE_DIM), stream(1)]
                 + [resident(w.shape) for w in weights],
        out_specs=pl.BlockSpec((1, TB), lambda i: (0, i)),
        compiler_params=pltpu.CompilerParams(
            dimension_semantics=("parallel",),
            vmem_limit_bytes=32 * 1024 * 1024),
    )(state, next_state, a2, *weights)

    out_flat = out.reshape(n_out)
    if n_out != B:
        out_flat = out_flat[:B]
    return out_flat.reshape(B, 1)


def _reference(state, action, next_state, params):
    """Pure-JAX reference matching the PyTorch module."""
    onehot = jax.nn.one_hot(action, ACTION_DIM, dtype=state.dtype)
    x = jnp.concatenate([state, onehot, next_state], axis=1)
    h = jnp.maximum(x @ params["w1"] + params["b1"], 0.0)
    h = jnp.maximum(h @ params["w2"] + params["b2"], 0.0)
    return jax.nn.sigmoid(h @ params["w3"] + params["b3"])


if __name__ == "__main__":
    key = jax.random.PRNGKey(0)
    k_param, k_state, k_action, k_next = jax.random.split(key, 4)
    params = init_params(k_param)

    # Small batch, B not a multiple of 8/128 -> exercises the partial-block path.
    B = 12
    state = jax.random.normal(k_state, (B, STATE_DIM), jnp.float32)
    action = jax.random.randint(k_action, (B,), 0, ACTION_DIM, jnp.int32)
    next_state = jax.random.normal(k_next, (B, STATE_DIM), jnp.float32)

    out = jax.block_until_ready(termination_predictor(state, action, next_state, params))
    ref = _reference(state, action, next_state, params)
    assert out.shape == (B, 1)
    assert jnp.allclose(out, ref, atol=2e-3, rtol=2e-3), "mismatch vs reference (B=12)"

    # Multi-block case with a partial tail block (grid=2, TB=1024, B=1500).
    B2 = 1500
    ks2 = jax.random.split(key, 3)
    state2 = jax.random.normal(ks2[0], (B2, STATE_DIM), jnp.float32)
    action2 = jax.random.randint(ks2[1], (B2,), 0, ACTION_DIM, jnp.int32)
    next2 = jax.random.normal(ks2[2], (B2, STATE_DIM), jnp.float32)

    out2 = jax.block_until_ready(
        termination_predictor(state2, action2, next2, params, block_b=1024))
    ref2 = _reference(state2, action2, next2, params)
    assert out2.shape == (B2, 1)
    assert jnp.allclose(out2, ref2, atol=2e-3, rtol=2e-3), "mismatch vs reference (B=1500)"

    print("KERNEL_OK")
</pallas_src>

<mosaic_0001>
module attributes {stable_mosaic.version = 11 : i64} {
  func.func @_termination_kernel(%arg0: i32, %arg1: memref<128x4xf32, #tpu.memory_space<vmem>>, %arg2: memref<128x4xf32, #tpu.memory_space<vmem>>, %arg3: memref<128x1xi32, #tpu.memory_space<vmem>>, %arg4: memref<4x128xf32, #tpu.memory_space<vmem>>, %arg5: memref<4x128xf32, #tpu.memory_space<vmem>>, %arg6: memref<1x128xf32, #tpu.memory_space<vmem>>, %arg7: memref<1x128xf32, #tpu.memory_space<vmem>>, %arg8: memref<128x64xf32, #tpu.memory_space<vmem>>, %arg9: memref<1x64xf32, #tpu.memory_space<vmem>>, %arg10: memref<1x64xf32, #tpu.memory_space<vmem>>, %arg11: memref<1x1xf32, #tpu.memory_space<vmem>>, %arg12: memref<1x128xf32, #tpu.memory_space<vmem>>) attributes {dimension_semantics = [#tpu.dimension_semantics<parallel>], iteration_bounds = array<i64: 1>, scalar_prefetch = 0 : i64, scratch_operands = 0 : i64, tpu.core_type = #tpu.core_type<tc>, window_params = [{transform_indices = @transform_0, window_bounds = array<i64: 128, 4>}, {transform_indices = @transform_1, window_bounds = array<i64: 128, 4>}, {transform_indices = @transform_2, window_bounds = array<i64: 128, 1>}, {pipeline_mode = #tpu.pipeline_mode<synchronous>, transform_indices = @transform_3, window_bounds = array<i64: 4, 128>}, {pipeline_mode = #tpu.pipeline_mode<synchronous>, transform_indices = @transform_4, window_bounds = array<i64: 4, 128>}, {pipeline_mode = #tpu.pipeline_mode<synchronous>, transform_indices = @transform_5, window_bounds = array<i64: 1, 128>}, {pipeline_mode = #tpu.pipeline_mode<synchronous>, transform_indices = @transform_6, window_bounds = array<i64: 1, 128>}, {pipeline_mode = #tpu.pipeline_mode<synchronous>, transform_indices = @transform_7, window_bounds = array<i64: 128, 64>}, {pipeline_mode = #tpu.pipeline_mode<synchronous>, transform_indices = @transform_8, window_bounds = array<i64: 1, 64>}, {pipeline_mode = #tpu.pipeline_mode<synchronous>, transform_indices = @transform_9, window_bounds = array<i64: 1, 64>}, {pipeline_mode = #tpu.pipeline_mode<synchronous>, transform_indices = @transform_10, window_bounds = array<i64: 1, 1>}, {transform_indices = @transform_11, window_bounds = array<i64: 1, 128>}]} {
    %c0 = arith.constant 0 : index
    %c0_0 = arith.constant 0 : index
    %0 = vector.load %arg1[%c0, %c0_0] : memref<128x4xf32, #tpu.memory_space<vmem>>, vector<128x4xf32>
    %c0_1 = arith.constant 0 : index
    %c0_2 = arith.constant 0 : index
    %1 = vector.load %arg4[%c0_1, %c0_2] : memref<4x128xf32, #tpu.memory_space<vmem>>, vector<4x128xf32>
    %cst = arith.constant dense<0.000000e+00> : vector<128x128xf32>
    %2 = tpu.matmul %0, %1, %cst {dimension_numbers = #tpu.dot_dimension_numbers<[1], [0], [0], [1], [0, 0, 1, 1], [], []>} : vector<128x4xf32>, vector<4x128xf32>, vector<128x128xf32> -> vector<128x128xf32>
    %c0_3 = arith.constant 0 : index
    %c0_4 = arith.constant 0 : index
    %3 = vector.load %arg2[%c0_3, %c0_4] : memref<128x4xf32, #tpu.memory_space<vmem>>, vector<128x4xf32>
    %c0_5 = arith.constant 0 : index
    %c0_6 = arith.constant 0 : index
    %4 = vector.load %arg5[%c0_5, %c0_6] : memref<4x128xf32, #tpu.memory_space<vmem>>, vector<4x128xf32>
    %cst_7 = arith.constant dense<0.000000e+00> : vector<128x128xf32>
    %5 = tpu.matmul %3, %4, %cst_7 {dimension_numbers = #tpu.dot_dimension_numbers<[1], [0], [0], [1], [0, 0, 1, 1], [], []>} : vector<128x4xf32>, vector<4x128xf32>, vector<128x128xf32> -> vector<128x128xf32>
    %6 = arith.addf %2, %5 : vector<128x128xf32>
    %c0_8 = arith.constant 0 : index
    %c0_9 = arith.constant 0 : index
    %7 = vector.load %arg3[%c0_8, %c0_9] : memref<128x1xi32, #tpu.memory_space<vmem>>, vector<128x1xi32>
    %8 = arith.sitofp %7 : vector<128x1xi32> to vector<128x1xf32>
    %c0_10 = arith.constant 0 : index
    %c0_11 = arith.constant 0 : index
    %9 = vector.load %arg6[%c0_10, %c0_11] : memref<1x128xf32, #tpu.memory_space<vmem>>, vector<1x128xf32>
    %10 = vector.broadcast %8 : vector<128x1xf32> to vector<128x128xf32>
    %11 = vector.broadcast %9 : vector<1x128xf32> to vector<128x128xf32>
    %12 = arith.mulf %10, %11 : vector<128x128xf32>
    %13 = arith.addf %6, %12 : vector<128x128xf32>
    %c0_12 = arith.constant 0 : index
    %c0_13 = arith.constant 0 : index
    %14 = vector.load %arg7[%c0_12, %c0_13] : memref<1x128xf32, #tpu.memory_space<vmem>>, vector<1x128xf32>
    %15 = vector.broadcast %14 : vector<1x128xf32> to vector<128x128xf32>
    %16 = arith.addf %13, %15 : vector<128x128xf32>
    %cst_14 = arith.constant 0.000000e+00 : f32
    %17 = vector.broadcast %cst_14 : f32 to vector<128x128xf32>
    %18 = arith.maximumf %16, %17 : vector<128x128xf32>
    %c0_15 = arith.constant 0 : index
    %c0_16 = arith.constant 0 : index
    %19 = vector.load %arg8[%c0_15, %c0_16] : memref<128x64xf32, #tpu.memory_space<vmem>>, vector<128x64xf32>
    %cst_17 = arith.constant dense<0.000000e+00> : vector<128x64xf32>
    %20 = tpu.matmul %18, %19, %cst_17 {dimension_numbers = #tpu.dot_dimension_numbers<[1], [0], [0], [1], [0, 0, 1, 1], [], []>} : vector<128x128xf32>, vector<128x64xf32>, vector<128x64xf32> -> vector<128x64xf32>
    %c0_18 = arith.constant 0 : index
    %c0_19 = arith.constant 0 : index
    %21 = vector.load %arg9[%c0_18, %c0_19] : memref<1x64xf32, #tpu.memory_space<vmem>>, vector<1x64xf32>
    %22 = vector.broadcast %21 : vector<1x64xf32> to vector<128x64xf32>
    %23 = arith.addf %20, %22 : vector<128x64xf32>
    %cst_20 = arith.constant 0.000000e+00 : f32
    %24 = vector.broadcast %cst_20 : f32 to vector<128x64xf32>
    %25 = arith.maximumf %23, %24 : vector<128x64xf32>
    %c0_21 = arith.constant 0 : index
    %c0_22 = arith.constant 0 : index
    %26 = vector.load %arg10[%c0_21, %c0_22] : memref<1x64xf32, #tpu.memory_space<vmem>>, vector<1x64xf32>
    %cst_23 = arith.constant dense<0.000000e+00> : vector<1x128xf32>
    %27 = tpu.matmul %26, %25, %cst_23 {dimension_numbers = #tpu.dot_dimension_numbers<[1], [1], [0], [0], [0, 0, 1, 0], [], []>} : vector<1x64xf32>, vector<128x64xf32>, vector<1x128xf32> -> vector<1x128xf32>
    %c0_24 = arith.constant 0 : index
    %c0_25 = arith.constant 0 : index
    %28 = vector.load %arg11[%c0_24, %c0_25] : memref<1x1xf32, #tpu.memory_space<vmem>>, vector<1x1xf32>
    %29 = vector.broadcast %28 : vector<1x1xf32> to vector<1x128xf32>
    %30 = arith.addf %27, %29 : vector<1x128xf32>
    %31 = arith.negf %30 : vector<1x128xf32>
    %32 = math.exp %31 : vector<1x128xf32>
    %cst_26 = arith.constant 1.000000e+00 : f32
    %33 = vector.broadcast %cst_26 : f32 to vector<1x128xf32>
    %34 = arith.addf %33, %32 : vector<1x128xf32>
    %35 = arith.divf %33, %34 : vector<1x128xf32>
    %c0_27 = arith.constant 0 : index
    %c0_28 = arith.constant 0 : index
    %36 = vector.load %arg12[%c0_27, %c0_28] : memref<1x128xf32, #tpu.memory_space<vmem>>, vector<1x128xf32>
    tpu.vector_store %arg12[%c0_27, %c0_28], %35 {strides = array<i32>} : memref<1x128xf32, #tpu.memory_space<vmem>>, vector<1x128xf32>,
    return
  }
  func.func @transform_0(%arg0: i32) -> (i32, i32) {
    %c0_i32 = arith.constant 0 : i32
    %c0_i32_0 = arith.constant 0 : i32
    return %arg0, %c0_i32 : i32, i32
  }
  func.func @transform_1(%arg0: i32) -> (i32, i32) {
    %c0_i32 = arith.constant 0 : i32
    %c0_i32_0 = arith.constant 0 : i32
    return %arg0, %c0_i32 : i32, i32
  }
  func.func @transform_2(%arg0: i32) -> (i32, i32) {
    %c0_i32 = arith.constant 0 : i32
    %c0_i32_0 = arith.constant 0 : i32
    return %arg0, %c0_i32 : i32, i32
  }
  func.func @transform_3(%arg0: i32) -> (i32, i32) {
    %c0_i32 = arith.constant 0 : i32
    %c0_i32_0 = arith.constant 0 : i32
    %c0_i32_1 = arith.constant 0 : i32
    return %c0_i32, %c0_i32_0 : i32, i32
  }
  func.func @transform_4(%arg0: i32) -> (i32, i32) {
    %c0_i32 = arith.constant 0 : i32
    %c0_i32_0 = arith.constant 0 : i32
    %c0_i32_1 = arith.constant 0 : i32
    return %c0_i32, %c0_i32_0 : i32, i32
  }
  func.func @transform_5(%arg0: i32) -> (i32, i32) {
    %c0_i32 = arith.constant 0 : i32
    %c0_i32_0 = arith.constant 0 : i32
    %c0_i32_1 = arith.constant 0 : i32
    return %c0_i32, %c0_i32_0 : i32, i32
  }
  func.func @transform_6(%arg0: i32) -> (i32, i32) {
    %c0_i32 = arith.constant 0 : i32
    %c0_i32_0 = arith.constant 0 : i32
    %c0_i32_1 = arith.constant 0 : i32
    return %c0_i32, %c0_i32_0 : i32, i32
  }
  func.func @transform_7(%arg0: i32) -> (i32, i32) {
    %c0_i32 = arith.constant 0 : i32
    %c0_i32_0 = arith.constant 0 : i32
    %c0_i32_1 = arith.constant 0 : i32
    return %c0_i32, %c0_i32_0 : i32, i32
  }
  func.func @transform_8(%arg0: i32) -> (i32, i32) {
    %c0_i32 = arith.constant 0 : i32
    %c0_i32_0 = arith.constant 0 : i32
    %c0_i32_1 = arith.constant 0 : i32
    return %c0_i32, %c0_i32_0 : i32, i32
  }
  func.func @transform_9(%arg0: i32) -> (i32, i32) {
    %c0_i32 = arith.constant 0 : i32
    %c0_i32_0 = arith.constant 0 : i32
    %c0_i32_1 = arith.constant 0 : i32
    return %c0_i32, %c0_i32_0 : i32, i32
  }
  func.func @transform_10(%arg0: i32) -> (i32, i32) {
    %c0_i32 = arith.constant 0 : i32
    %c0_i32_0 = arith.constant 0 : i32
    %c0_i32_1 = arith.constant 0 : i32
    return %c0_i32, %c0_i32_0 : i32, i32
  }
  func.func @transform_11(%arg0: i32) -> (i32, i32) {
    %c0_i32 = arith.constant 0 : i32
    %c0_i32_0 = arith.constant 0 : i32
    return %c0_i32, %arg0 : i32, i32
  }
}

</mosaic_0001>

<llo_original>
// kernel: tpu_custom_call.1
$region0: #{tpu_custom_call.1}
  #allocation0 [shape = 'u32[]', space=smem, size = 0x4, offset = 0x4, fixed_abs, tag = 'smem constant byte address 0x4 - core index']
  #allocation1 [shape = 'u32[72,128]{1,0:T(1,128)}', space=vmem, size = 0x9000, scoped, tag = 'internal scratch']
  #allocation2 [shape = 'f32[1,1]{1,0:T(1,128)S(1)}', space=vmem, size = 0x200, scoped, tag = 'scoped memory for tpu_custom_call.1']
  %s0 = inlined_call_operand.vmem [shape: f32[12,4], index: 0, kind: input, shape index: {}]
  %s1 = inlined_call_operand.vmem [shape: f32[12,4], index: 1, kind: input, shape index: {}]
  %s2 = inlined_call_operand.vmem [shape: s32[12,1], index: 2, kind: input, shape index: {}]
  %s3 = inlined_call_operand.vmem [shape: f32[4,128], index: 3, kind: input, shape index: {}]
  %s4 = inlined_call_operand.vmem [shape: f32[4,128], index: 4, kind: input, shape index: {}]
  %s5 = inlined_call_operand.vmem [shape: f32[1,128], index: 5, kind: input, shape index: {}]
  %s6 = inlined_call_operand.vmem [shape: f32[1,128], index: 6, kind: input, shape index: {}]
  %s7 = inlined_call_operand.vmem [shape: f32[128,64], index: 7, kind: input, shape index: {}]
  %s8 = inlined_call_operand.vmem [shape: f32[1,64], index: 8, kind: input, shape index: {}]
  %s9 = inlined_call_operand.vmem [shape: f32[1,64], index: 9, kind: input, shape index: {}]
  %s10 = inlined_call_operand.<no memory space> [shape: f32[1,1], index: 10, kind: input, shape index: {}]
  %s11 = inlined_call_operand.hbm [shape: f32[1,128], index: 11, kind: output, shape index: {}]
  %s12 = sld [smem:[#allocation0]]
  $region54: #{tpu_custom_call.1} parent=0
    _
  %s14 = ssub.s32 1, %s12
  %s15 = scalar_select 0, %s14, %s12
  %v16 = vstv %s10
  %17 = vst [vmem:[#allocation2] sm:$0x1] %v16
  $region1: #{tpu_custom_call.1} parent=0
    #allocation3 [shape = 'u8[512]{0}', space=vmem, size = 0x400, scoped, tag = 'output window, operand 0, single buffered']
    #allocation4 [shape = 's32[1]{0}', space=sflag, size = 0x4, scoped, tag = 'scoped memory for tpu_custom_call.1']
    %18 = vsyncpa [#allocation4], 0
    // Predicated region
    $region2: #{tpu_custom_call.1} parent=1 // pred_check
      _
    $region3: #{tpu_custom_call.1} parent=1 // pred_check_branch
      %20 = sbr.rel (0) target = $region5
    $region4: #{tpu_custom_call.1} parent=1 // pred_region
      _
    $region5: #{tpu_custom_call.1} parent=1 // pred_fallthru
      _
    // Predicated region
    $region6: #{tpu_custom_call.1} parent=1 // pred_check
      _
    $region7: #{tpu_custom_call.1} parent=1 // pred_check_branch
      %22 = sbr.rel (0) target = $region9
    $region8: #{tpu_custom_call.1} parent=1 // pred_region
      _
    $region9: #{tpu_custom_call.1} parent=1 // pred_fallthru
      _
    // Predicated region
    $region10: #{tpu_custom_call.1} parent=1 // pred_check
      _
    $region11: #{tpu_custom_call.1} parent=1 // pred_check_branch
      %24 = sbr.rel (0) target = $region13
    $region12: #{tpu_custom_call.1} parent=1 // pred_region
      _
    $region13: #{tpu_custom_call.1} parent=1 // pred_fallthru
      _
    // Predicated region
    $region14: #{tpu_custom_call.1} parent=1 // pred_check
      _
    $region15: #{tpu_custom_call.1} parent=1 // pred_check_branch
      %26 = sbr.rel (0) target = $region17
    $region16: #{tpu_custom_call.1} parent=1 // pred_region
      _
    $region17: #{tpu_custom_call.1} parent=1 // pred_fallthru
      _
    // Predicated region
    $region18: #{tpu_custom_call.1} parent=1 // pred_check
      _
    $region19: #{tpu_custom_call.1} parent=1 // pred_check_branch
      %28 = sbr.rel (0) target = $region21
    $region20: #{tpu_custom_call.1} parent=1 // pred_region
      _
    $region21: #{tpu_custom_call.1} parent=1 // pred_fallthru
      _
    // Predicated region
    $region22: #{tpu_custom_call.1} parent=1 // pred_check
      _
    $region23: #{tpu_custom_call.1} parent=1 // pred_check_branch
      %30 = sbr.rel (0) target = $region25
    $region24: #{tpu_custom_call.1} parent=1 // pred_region
      _
    $region25: #{tpu_custom_call.1} parent=1 // pred_fallthru
      _
    // Predicated region
    $region26: #{tpu_custom_call.1} parent=1 // pred_check
      _
    $region27: #{tpu_custom_call.1} parent=1 // pred_check_branch
      %32 = sbr.rel (0) target = $region29
    $region28: #{tpu_custom_call.1} parent=1 // pred_region
      _
    $region29: #{tpu_custom_call.1} parent=1 // pred_fallthru
      _
    // Predicated region
    $region30: #{tpu_custom_call.1} parent=1 // pred_check
      _
    $region31: #{tpu_custom_call.1} parent=1 // pred_check_branch
      %34 = sbr.rel (0) target = $region33
    $region32: #{tpu_custom_call.1} parent=1 // pred_region
      _
    $region33: #{tpu_custom_call.1} parent=1 // pred_fallthru
      _
    // Predicated region
    $region34: #{tpu_custom_call.1} parent=1 // pred_check
      _
    $region35: #{tpu_custom_call.1} parent=1 // pred_check_branch
      %36 = sbr.rel (0) target = $region37
    $region36: #{tpu_custom_call.1} parent=1 // pred_region
      _
    $region37: #{tpu_custom_call.1} parent=1 // pred_fallthru
      _
    // Predicated region
    $region38: #{tpu_custom_call.1} parent=1 // pred_check
      _
    $region39: #{tpu_custom_call.1} parent=1 // pred_check_branch
      %38 = sbr.rel (0) target = $region41
    $region40: #{tpu_custom_call.1} parent=1 // pred_region
      _
    $region41: #{tpu_custom_call.1} parent=1 // pred_fallthru
      _
    // Predicated region
    $region42: #{tpu_custom_call.1} parent=1 // pred_check
      _
    $region43: #{tpu_custom_call.1} parent=1 // pred_check_branch
      %40 = sbr.rel (0) target = $region45
    $region44: #{tpu_custom_call.1} parent=1 // pred_region
      _
    $region45: #{tpu_custom_call.1} parent=1 // pred_fallthru
      _
    %v41 = vld [vmem:[%s0] sm:$0xff]
    %v42 = vld [vmem:[%s0 + $0x8] sm:$0xff]
    %v43 = vld [vmem:[%s0 + $0x10] sm:$0xff]
    %v44 = vld [vmem:[%s0 + $0x18] sm:$0xff]
    %v45 = vld [vmem:[%s0 + $0x20] sm:$0xff]
    %v46 = vld [vmem:[%s0 + $0x28] sm:$0xff]
    %v47 = vld [vmem:[%s0 + $0x30] sm:$0xff]
    %v48 = vld [vmem:[%s0 + $0x38] sm:$0xff]
    %v49 = vld [vmem:[%s0 + $0x40] sm:$0xff]
    %v50 = vld [vmem:[%s0 + $0x48] sm:$0xff]
    %v51 = vld [vmem:[%s0 + $0x50] sm:$0xff]
    %v52 = vld [vmem:[%s0 + $0x58] sm:$0xff]
    %v53 = vld [vmem:[%s0 + $0x60] sm:$0xff]
    %v54 = vld [vmem:[%s0 + $0x68] sm:$0xff]
    %v55 = vld [vmem:[%s0 + $0x70] sm:$0xff]
    %v56 = vld [vmem:[%s0 + $0x78] sm:$0xff]
    %v57 = vld [vmem:[%s3] sm:$0xf]
    %v58 = vld [vmem:[%s1] sm:$0xff]
    %v59 = vld [vmem:[%s1 + $0x8] sm:$0xff]
    %v60 = vld [vmem:[%s1 + $0x10] sm:$0xff]
    %v61 = vld [vmem:[%s1 + $0x18] sm:$0xff]
    %v62 = vld [vmem:[%s1 + $0x20] sm:$0xff]
    %v63 = vld [vmem:[%s1 + $0x28] sm:$0xff]
    %v64 = vld [vmem:[%s1 + $0x30] sm:$0xff]
    %v65 = vld [vmem:[%s1 + $0x38] sm:$0xff]
    %v66 = vld [vmem:[%s1 + $0x40] sm:$0xff]
    %v67 = vld [vmem:[%s1 + $0x48] sm:$0xff]
    %v68 = vld [vmem:[%s1 + $0x50] sm:$0xff]
    %v69 = vld [vmem:[%s1 + $0x58] sm:$0xff]
    %v70 = vld [vmem:[%s1 + $0x60] sm:$0xff]
    %v71 = vld [vmem:[%s1 + $0x68] sm:$0xff]
    %v72 = vld [vmem:[%s1 + $0x70] sm:$0xff]
    %v73 = vld [vmem:[%s1 + $0x78] sm:$0xff]
    %v74 = vld [vmem:[%s4] sm:$0xf]
    %vm75 = vcmask 31744
    %v77 = vsel %vm75, %v58, 0
    %v80 = vsel %vm75, %v59, 0
    %v83 = vsel %vm75, %v60, 0
    %v86 = vsel %vm75, %v61, 0
    %v89 = vsel %vm75, %v62, 0
    %v92 = vsel %vm75, %v63, 0
    %v95 = vsel %vm75, %v64, 0
    %v98 = vsel %vm75, %v65, 0
    %v101 = vsel %vm75, %v66, 0
    %v104 = vsel %vm75, %v67, 0
    %v107 = vsel %vm75, %v68, 0
    %v110 = vsel %vm75, %v69, 0
    %v113 = vsel %vm75, %v70, 0
    %v116 = vsel %vm75, %v71, 0
    %v119 = vsel %vm75, %v72, 0
    %v122 = vsel %vm75, %v73, 0
    %vm124 = vcmask 1043456
    %v126 = vsel %vm124, %v74, 0
    %128 = vmatpush.msra.mxu0 0.0
    %129 = vmatpush.msra.mxu0 0.0
    %130 = vmatpush.msra.mxu0 0.0
    %131 = vmatpush.msra.mxu0 0.0
    %132 = vmatpush.msra.mxu0 0.0
    %133 = vmatpush.msra.mxu0 0.0
    %134 = vmatpush.msra.mxu0 0.0
    %135 = vmatpush.msra.mxu0 0.0
    %136 = vmatpush.msra.mxu0 0.0
    %137 = vmatpush.msra.mxu0 0.0
    %138 = vmatpush.msra.mxu0 0.0
    %139 = vmatpush.msra.mxu0 0.0
    %140 = vmatpush.msra.mxu0 0.0
    %141 = vmatpush.msra.mxu0 0.0
    %142 = vmatpush.msra.mxu0 0.0
    %143 = vmatpush.msra.mxu0 %v126
    %144 = vmatmul.f32.gmra.mxu0 %v77
    %v145 = vpop.f32.mrf.mxu0
    %v146 = vadd.f32 0.0, %v145
    %147 = vmatmul.f32.gmra.mxu0 %v80
    %v148 = vpop.f32.mrf.mxu0
    %v149 = vadd.f32 0.0, %v148
    %150 = vmatmul.f32.gmra.mxu0 %v83
    %v151 = vpop.f32.mrf.mxu0
    %v152 = vadd.f32 0.0, %v151
    %153 = vmatmul.f32.gmra.mxu0 %v86
    %v154 = vpop.f32.mrf.mxu0
    %v155 = vadd.f32 0.0, %v154
    %156 = vmatmul.f32.gmra.mxu0 %v89
    %v157 = vpop.f32.mrf.mxu0
    %v158 = vadd.f32 0.0, %v157
    %159 = vmatmul.f32.gmra.mxu0 %v92
    %v160 = vpop.f32.mrf.mxu0
    %v161 = vadd.f32 0.0, %v160
    %162 = vmatmul.f32.gmra.mxu0 %v95
    %v163 = vpop.f32.mrf.mxu0
    %v164 = vadd.f32 0.0, %v163
    %165 = vmatmul.f32.gmra.mxu0 %v98
    %v166 = vpop.f32.mrf.mxu0
    %v167 = vadd.f32 0.0, %v166
    %168 = vmatmul.f32.gmra.mxu0 %v101
    %v169 = vpop.f32.mrf.mxu0
    %v170 = vadd.f32 0.0, %v169
    %171 = vmatmul.f32.gmra.mxu0 %v104
    %v172 = vpop.f32.mrf.mxu0
    %v173 = vadd.f32 0.0, %v172
    %174 = vmatmul.f32.gmra.mxu0 %v107
    %v175 = vpop.f32.mrf.mxu0
    %v176 = vadd.f32 0.0, %v175
    %177 = vmatmul.f32.gmra.mxu0 %v110
    %v178 = vpop.f32.mrf.mxu0
    %v179 = vadd.f32 0.0, %v178
    %180 = vmatmul.f32.gmra.mxu0 %v113
    %v181 = vpop.f32.mrf.mxu0
    %v182 = vadd.f32 0.0, %v181
    %183 = vmatmul.f32.gmra.mxu0 %v116
    %v184 = vpop.f32.mrf.mxu0
    %v185 = vadd.f32 0.0, %v184
    %186 = vmatmul.f32.gmra.mxu0 %v119
    %v187 = vpop.f32.mrf.mxu0
    %v188 = vadd.f32 0.0, %v187
    %189 = vmatmul.f32.gmra.mxu0 %v122
    %v190 = vpop.f32.mrf.mxu0
    %v191 = vadd.f32 0.0, %v190
    %192 = vdwg.mxu0
    %v194 = vsel %vm75, %v41, 0
    %v197 = vsel %vm75, %v42, 0
    %v200 = vsel %vm75, %v43, 0
    %v203 = vsel %vm75, %v44, 0
    %v206 = vsel %vm75, %v45, 0
    %v209 = vsel %vm75, %v46, 0
    %v212 = vsel %vm75, %v47, 0
    %v215 = vsel %vm75, %v48, 0
    %v218 = vsel %vm75, %v49, 0
    %v221 = vsel %vm75, %v50, 0
    %v224 = vsel %vm75, %v51, 0
    %v227 = vsel %vm75, %v52, 0
    %v230 = vsel %vm75, %v53, 0
    %v233 = vsel %vm75, %v54, 0
    %v236 = vsel %vm75, %v55, 0
    %v239 = vsel %vm75, %v56, 0
    %v242 = vsel %vm124, %v57, 0
    %244 = vmatpush.msra.mxu0 0.0
    %245 = vmatpush.msra.mxu0 0.0
    %246 = vmatpush.msra.mxu0 0.0
    %247 = vmatpush.msra.mxu0 0.0
    %248 = vmatpush.msra.mxu0 0.0
    %249 = vmatpush.msra.mxu0 0.0
    %250 = vmatpush.msra.mxu0 0.0
    %251 = vmatpush.msra.mxu0 0.0
    %252 = vmatpush.msra.mxu0 0.0
    %253 = vmatpush.msra.mxu0 0.0
    %254 = vmatpush.msra.mxu0 0.0
    %255 = vmatpush.msra.mxu0 0.0
    %256 = vmatpush.msra.mxu0 0.0
    %257 = vmatpush.msra.mxu0 0.0
    %258 = vmatpush.msra.mxu0 0.0
    %259 = vmatpush.msra.mxu0 %v242
    %260 = vmatmul.f32.gmra.mxu0 %v194
    %v261 = vpop.f32.mrf.mxu0
    %v262 = vadd.f32 %v146, %v261
    %263 = vmatmul.f32.gmra.mxu0 %v197
    %v264 = vpop.f32.mrf.mxu0
    %v265 = vadd.f32 %v149, %v264
    %266 = vmatmul.f32.gmra.mxu0 %v200
    %v267 = vpop.f32.mrf.mxu0
    %v268 = vadd.f32 %v152, %v267
    %269 = vmatmul.f32.gmra.mxu0 %v203
    %v270 = vpop.f32.mrf.mxu0
    %v271 = vadd.f32 %v155, %v270
    %272 = vmatmul.f32.gmra.mxu0 %v206
    %v273 = vpop.f32.mrf.mxu0
    %v274 = vadd.f32 %v158, %v273
    %275 = vmatmul.f32.gmra.mxu0 %v209
    %v276 = vpop.f32.mrf.mxu0
    %v277 = vadd.f32 %v161, %v276
    %278 = vmatmul.f32.gmra.mxu0 %v212
    %v279 = vpop.f32.mrf.mxu0
    %v280 = vadd.f32 %v164, %v279
    %281 = vmatmul.f32.gmra.mxu0 %v215
    %v282 = vpop.f32.mrf.mxu0
    %v283 = vadd.f32 %v167, %v282
    %284 = vmatmul.f32.gmra.mxu0 %v218
    %v285 = vpop.f32.mrf.mxu0
    %v286 = vadd.f32 %v170, %v285
    %287 = vmatmul.f32.gmra.mxu0 %v221
    %v288 = vpop.f32.mrf.mxu0
    %v289 = vadd.f32 %v173, %v288
    %290 = vmatmul.f32.gmra.mxu0 %v224
    %v291 = vpop.f32.mrf.mxu0
    %v292 = vadd.f32 %v176, %v291
    %293 = vmatmul.f32.gmra.mxu0 %v227
    %v294 = vpop.f32.mrf.mxu0
    %v295 = vadd.f32 %v179, %v294
    %296 = vmatmul.f32.gmra.mxu0 %v230
    %v297 = vpop.f32.mrf.mxu0
    %v298 = vadd.f32 %v182, %v297
    %299 = vmatmul.f32.gmra.mxu0 %v233
    %v300 = vpop.f32.mrf.mxu0
    %v301 = vadd.f32 %v185, %v300
    %302 = vmatmul.f32.gmra.mxu0 %v236
    %v303 = vpop.f32.mrf.mxu0
    %v304 = vadd.f32 %v188, %v303
    %305 = vmatmul.f32.gmra.mxu0 %v239
    %v306 = vpop.f32.mrf.mxu0
    %v307 = vadd.f32 %v191, %v306
    %308 = vdwg.mxu0
    %v309 = vld [vmem:[%s2] sm:$0xff]
    %v310 = vld [vmem:[%s2 + $0x8] sm:$0xff]
    %v311 = vld [vmem:[%s2 + $0x10] sm:$0xff]
    %v312 = vld [vmem:[%s2 + $0x18] sm:$0xff]
    %v313 = vld [vmem:[%s2 + $0x20] sm:$0xff]
    %v314 = vld [vmem:[%s2 + $0x28] sm:$0xff]
    %v315 = vld [vmem:[%s2 + $0x30] sm:$0xff]
    %v316 = vld [vmem:[%s2 + $0x38] sm:$0xff]
    %v317 = vld [vmem:[%s2 + $0x40] sm:$0xff]
    %v318 = vld [vmem:[%s2 + $0x48] sm:$0xff]
    %v319 = vld [vmem:[%s2 + $0x50] sm:$0xff]
    %v320 = vld [vmem:[%s2 + $0x58] sm:$0xff]
    %v321 = vld [vmem:[%s2 + $0x60] sm:$0xff]
    %v322 = vld [vmem:[%s2 + $0x68] sm:$0xff]
    %v323 = vld [vmem:[%s2 + $0x70] sm:$0xff]
    %v324 = vld [vmem:[%s2 + $0x78] sm:$0xff]
    %v325 = vcvt.s32.f32 %v309
    %v326 = vcvt.s32.f32 %v310
    %v327 = vcvt.s32.f32 %v311
    %v328 = vcvt.s32.f32 %v312
    %v329 = vcvt.s32.f32 %v313
    %v330 = vcvt.s32.f32 %v314
    %v331 = vcvt.s32.f32 %v315
    %v332 = vcvt.s32.f32 %v316
    %v333 = vcvt.s32.f32 %v317
    %v334 = vcvt.s32.f32 %v318
    %v335 = vcvt.s32.f32 %v319
    %v336 = vcvt.s32.f32 %v320
    %v337 = vcvt.s32.f32 %v321
    %v338 = vcvt.s32.f32 %v322
    %v339 = vcvt.s32.f32 %v323
    %v340 = vcvt.s32.f32 %v324
    %v341 = vld [vmem:[%s5] sm:$0x1]
    %343 = vset.pattern.permute.xlu0 0
    %344 = vperm.xlu0 %343, %v325
    %v345 = vpop.permute.xlu0 %344
    %348 = vset.pattern.permute.xlu0 0
    %349 = vperm.xlu0 %348, %v326
    %v350 = vpop.permute.xlu0 %349
    %353 = vset.pattern.permute.xlu0 0
    %354 = vperm.xlu0 %353, %v327
    %v355 = vpop.permute.xlu0 %354
    %358 = vset.pattern.permute.xlu0 0
    %359 = vperm.xlu0 %358, %v328
    %v360 = vpop.permute.xlu0 %359
    %363 = vset.pattern.permute.xlu0 0
    %364 = vperm.xlu0 %363, %v329
    %v365 = vpop.permute.xlu0 %364
    %368 = vset.pattern.permute.xlu0 0
    %369 = vperm.xlu0 %368, %v330
    %v370 = vpop.permute.xlu0 %369
    %373 = vset.pattern.permute.xlu0 0
    %374 = vperm.xlu0 %373, %v331
    %v375 = vpop.permute.xlu0 %374
    %378 = vset.pattern.permute.xlu0 0
    %379 = vperm.xlu0 %378, %v332
    %v380 = vpop.permute.xlu0 %379
    %383 = vset.pattern.permute.xlu0 0
    %384 = vperm.xlu0 %383, %v333
    %v385 = vpop.permute.xlu0 %384
    %388 = vset.pattern.permute.xlu0 0
    %389 = vperm.xlu0 %388, %v334
    %v390 = vpop.permute.xlu0 %389
    %393 = vset.pattern.permute.xlu0 0
    %394 = vperm.xlu0 %393, %v335
    %v395 = vpop.permute.xlu0 %394
    %398 = vset.pattern.permute.xlu0 0
    %399 = vperm.xlu0 %398, %v336
    %v400 = vpop.permute.xlu0 %399
    %403 = vset.pattern.permute.xlu0 0
    %404 = vperm.xlu0 %403, %v337
    %v405 = vpop.permute.xlu0 %404
    %408 = vset.pattern.permute.xlu0 0
    %409 = vperm.xlu0 %408, %v338
    %v410 = vpop.permute.xlu0 %409
    %413 = vset.pattern.permute.xlu0 0
    %414 = vperm.xlu0 %413, %v339
    %v415 = vpop.permute.xlu0 %414
    %418 = vset.pattern.permute.xlu0 0
    %419 = vperm.xlu0 %418, %v340
    %v420 = vpop.permute.xlu0 %419
    %v423 = vperm.slane %v341, 0
    %v425 = vmul.f32 %v345, %v423
    %v426 = vmul.f32 %v350, %v423
    %v427 = vmul.f32 %v355, %v423
    %v428 = vmul.f32 %v360, %v423
    %v429 = vmul.f32 %v365, %v423
    %v430 = vmul.f32 %v370, %v423
    %v431 = vmul.f32 %v375, %v423
    %v432 = vmul.f32 %v380, %v423
    %v433 = vmul.f32 %v385, %v423
    %v434 = vmul.f32 %v390, %v423
    %v435 = vmul.f32 %v395, %v423
    %v436 = vmul.f32 %v400, %v423
    %v437 = vmul.f32 %v405, %v423
    %v438 = vmul.f32 %v410, %v423
    %v439 = vmul.f32 %v415, %v423
    %v440 = vmul.f32 %v420, %v423
    %v441 = vadd.f32 %v262, %v425
    %v442 = vadd.f32 %v265, %v426
    %v443 = vadd.f32 %v268, %v427
    %v444 = vadd.f32 %v271, %v428
    %v445 = vadd.f32 %v274, %v429
    %v446 = vadd.f32 %v277, %v430
    %v447 = vadd.f32 %v280, %v431
    %v448 = vadd.f32 %v283, %v432
    %v449 = vadd.f32 %v286, %v433
    %v450 = vadd.f32 %v289, %v434
    %v451 = vadd.f32 %v292, %v435
    %v452 = vadd.f32 %v295, %v436
    %v453 = vadd.f32 %v298, %v437
    %v454 = vadd.f32 %v301, %v438
    %v455 = vadd.f32 %v304, %v439
    %v456 = vadd.f32 %v307, %v440
    %v457 = vld [vmem:[%s6] sm:$0x1]
    %v459 = vperm.slane %v457, 0
    %v461 = vadd.f32 %v441, %v459
    %v462 = vadd.f32 %v442, %v459
    %v463 = vadd.f32 %v443, %v459
    %v464 = vadd.f32 %v444, %v459
    %v465 = vadd.f32 %v445, %v459
    %v466 = vadd.f32 %v446, %v459
    %v467 = vadd.f32 %v447, %v459
    %v468 = vadd.f32 %v448, %v459
    %v469 = vadd.f32 %v449, %v459
    %v470 = vadd.f32 %v450, %v459
    %v471 = vadd.f32 %v451, %v459
    %v472 = vadd.f32 %v452, %v459
    %v473 = vadd.f32 %v453, %v459
    %v474 = vadd.f32 %v454, %v459
    %v475 = vadd.f32 %v455, %v459
    %v476 = vadd.f32 %v456, %v459
    %v477 = vmax.f32 %v461, 0.0
    %v478 = vmax.f32 %v462, 0.0
    %v479 = vmax.f32 %v463, 0.0
    %v480 = vmax.f32 %v464, 0.0
    %v481 = vmax.f32 %v465, 0.0
    %v482 = vmax.f32 %v466, 0.0
    %v483 = vmax.f32 %v467, 0.0
    %v484 = vmax.f32 %v468, 0.0
    %v485 = vmax.f32 %v469, 0.0
    %v486 = vmax.f32 %v470, 0.0
    %v487 = vmax.f32 %v471, 0.0
    %v488 = vmax.f32 %v472, 0.0
    %v489 = vmax.f32 %v473, 0.0
    %v490 = vmax.f32 %v474, 0.0
    %v491 = vmax.f32 %v475, 0.0
    %v492 = vmax.f32 %v476, 0.0
    %v493 = vld [vmem:[%s7] sm:$0xff]
    %v494 = vld [vmem:[%s7 + $0x8] sm:$0xff]
    %v495 = vld [vmem:[%s7 + $0x10] sm:$0xff]
    %v496 = vld [vmem:[%s7 + $0x18] sm:$0xff]
    %v497 = vld [vmem:[%s7 + $0x20] sm:$0xff]
    %v498 = vld [vmem:[%s7 + $0x28] sm:$0xff]
    %v499 = vld [vmem:[%s7 + $0x30] sm:$0xff]
    %v500 = vld [vmem:[%s7 + $0x38] sm:$0xff]
    %v501 = vld [vmem:[%s7 + $0x40] sm:$0xff]
    %v502 = vld [vmem:[%s7 + $0x48] sm:$0xff]
    %v503 = vld [vmem:[%s7 + $0x50] sm:$0xff]
    %v504 = vld [vmem:[%s7 + $0x58] sm:$0xff]
    %v505 = vld [vmem:[%s7 + $0x60] sm:$0xff]
    %v506 = vld [vmem:[%s7 + $0x68] sm:$0xff]
    %v507 = vld [vmem:[%s7 + $0x70] sm:$0xff]
    %v508 = vld [vmem:[%s7 + $0x78] sm:$0xff]
    %v509 = vld [vmem:[%s8] sm:$0x1]
    %v511 = vperm.slane %v509, 0
    %513 = vmatpush.msra.mxu0 %v508
    %514 = vmatpush.msra.mxu0 %v507
    %515 = vmatpush.msra.mxu0 %v506
    %516 = vmatpush.msra.mxu0 %v505
    %517 = vmatpush.msra.mxu0 %v504
    %518 = vmatpush.msra.mxu0 %v503
    %519 = vmatpush.msra.mxu0 %v502
    %520 = vmatpush.msra.mxu0 %v501
    %521 = vmatpush.msra.mxu0 %v500
    %522 = vmatpush.msra.mxu0 %v499
    %523 = vmatpush.msra.mxu0 %v498
    %524 = vmatpush.msra.mxu0 %v497
    %525 = vmatpush.msra.mxu0 %v496
    %526 = vmatpush.msra.mxu0 %v495
    %527 = vmatpush.msra.mxu0 %v494
    %528 = vmatpush.msra.mxu0 %v493
    %529 = vmatmul.f32.gmra.mxu0 %v477
    %v530 = vpop.f32.mrf.mxu0
    %v531 = vadd.f32 %v511, %v530
    %532 = vmatmul.f32.gmra.mxu0 %v478
    %v533 = vpop.f32.mrf.mxu0
    %v534 = vadd.f32 %v511, %v533
    %535 = vmatmul.f32.gmra.mxu0 %v479
    %v536 = vpop.f32.mrf.mxu0
    %v537 = vadd.f32 %v511, %v536
    %538 = vmatmul.f32.gmra.mxu0 %v480
    %v539 = vpop.f32.mrf.mxu0
    %v540 = vadd.f32 %v511, %v539
    %541 = vmatmul.f32.gmra.mxu0 %v481
    %v542 = vpop.f32.mrf.mxu0
    %v543 = vadd.f32 %v511, %v542
    %544 = vmatmul.f32.gmra.mxu0 %v482
    %v545 = vpop.f32.mrf.mxu0
    %v546 = vadd.f32 %v511, %v545
    %547 = vmatmul.f32.gmra.mxu0 %v483
    %v548 = vpop.f32.mrf.mxu0
    %v549 = vadd.f32 %v511, %v548
    %550 = vmatmul.f32.gmra.mxu0 %v484
    %v551 = vpop.f32.mrf.mxu0
    %v552 = vadd.f32 %v511, %v551
    %553 = vmatmul.f32.gmra.mxu0 %v485
    %v554 = vpop.f32.mrf.mxu0
    %v555 = vadd.f32 %v511, %v554
    %556 = vmatmul.f32.gmra.mxu0 %v486
    %v557 = vpop.f32.mrf.mxu0
    %v558 = vadd.f32 %v511, %v557
    %559 = vmatmul.f32.gmra.mxu0 %v487
    %v560 = vpop.f32.mrf.mxu0
    %v561 = vadd.f32 %v511, %v560
    %562 = vmatmul.f32.gmra.mxu0 %v488
    %v563 = vpop.f32.mrf.mxu0
    %v564 = vadd.f32 %v511, %v563
    %565 = vmatmul.f32.gmra.mxu0 %v489
    %v566 = vpop.f32.mrf.mxu0
    %v567 = vadd.f32 %v511, %v566
    %568 = vmatmul.f32.gmra.mxu0 %v490
    %v569 = vpop.f32.mrf.mxu0
    %v570 = vadd.f32 %v511, %v569
    %571 = vmatmul.f32.gmra.mxu0 %v491
    %v572 = vpop.f32.mrf.mxu0
    %v573 = vadd.f32 %v511, %v572
    %574 = vmatmul.f32.gmra.mxu0 %v492
    %v575 = vpop.f32.mrf.mxu0
    %v576 = vadd.f32 %v511, %v575
    %577 = vdwg.mxu0
    %v578 = vmax.f32 %v531, 0.0
    %v579 = vmax.f32 %v534, 0.0
    %v580 = vmax.f32 %v537, 0.0
    %v581 = vmax.f32 %v540, 0.0
    %v582 = vmax.f32 %v543, 0.0
    %v583 = vmax.f32 %v546, 0.0
    %v584 = vmax.f32 %v549, 0.0
    %v585 = vmax.f32 %v552, 0.0
    %v586 = vmax.f32 %v555, 0.0
    %v587 = vmax.f32 %v558, 0.0
    %v588 = vmax.f32 %v561, 0.0
    %v589 = vmax.f32 %v564, 0.0
    %v590 = vmax.f32 %v567, 0.0
    %v591 = vmax.f32 %v570, 0.0
    %v592 = vmax.f32 %v573, 0.0
    %v593 = vmax.f32 %v576, 0.0
    %v594 = vld [vmem:[%s9] sm:$0x1]
    %v595 = vld [vmem:[#allocation2] sm:$0x1]
    %597 = vset.pattern.permute.xlu0 0
    %598 = vperm.xlu0 %597, %v595
    %v599 = vpop.permute.xlu0 %598
    %v601 = vperm.slane %v599, 0
    %vm602 = vcmask 523264
    %v604 = vsel %vm602, %v594, 0
    %v607 = vsel %vm602, %v578, 0
    %v610 = vsel %vm602, %v579, 0
    %v613 = vsel %vm602, %v580, 0
    %v616 = vsel %vm602, %v581, 0
    %v619 = vsel %vm602, %v582, 0
    %v622 = vsel %vm602, %v583, 0
    %v625 = vsel %vm602, %v584, 0
    %v628 = vsel %vm602, %v585, 0
    %v631 = vsel %vm602, %v586, 0
    %v634 = vsel %vm602, %v587, 0
    %v637 = vsel %vm602, %v588, 0
    %v640 = vsel %vm602, %v589, 0
    %v643 = vsel %vm602, %v590, 0
    %v646 = vsel %vm602, %v591, 0
    %v649 = vsel %vm602, %v592, 0
    %v652 = vsel %vm602, %v593, 0
    %654 = vmatpush.xpose.msra.mxu0 %v652
    %655 = vmatpush.xpose.msra.mxu0 %v649
    %656 = vmatpush.xpose.msra.mxu0 %v646
    %657 = vmatpush.xpose.msra.mxu0 %v643
    %658 = vmatpush.xpose.msra.mxu0 %v640
    %659 = vmatpush.xpose.msra.mxu0 %v637
    %660 = vmatpush.xpose.msra.mxu0 %v634
    %661 = vmatpush.xpose.msra.mxu0 %v631
    %662 = vmatpush.xpose.msra.mxu0 %v628
    %663 = vmatpush.xpose.msra.mxu0 %v625
    %664 = vmatpush.xpose.msra.mxu0 %v622
    %665 = vmatpush.xpose.msra.mxu0 %v619
    %666 = vmatpush.xpose.msra.mxu0 %v616
    %667 = vmatpush.xpose.msra.mxu0 %v613
    %668 = vmatpush.xpose.msra.mxu0 %v610
    %669 = vmatpush.xpose.msra.mxu0 %v607
    %670 = vmatmul.f32.gmra.mxu0 %v604
    %v671 = vpop.f32.mrf.mxu0
    %v672 = vadd.f32 %v601, %v671
    %673 = vdwg.mxu0
    %v674 = vxor.u32 %v672, 2147483648
    %v675 = vmul.f32 %v674, 1.442695
    %v676 = vpow.pop %v675
    %v677 = vadd.f32 %v676, 1.0
    %v678 = vrcp.pop %v677
    %v679 = vmul.f32 %v677, %v678
    %v680 = vsub.f32 1.0, %v679
    %v681 = vmul.f32 %v678, %v680
    %v682 = vadd.f32 %v678, %v681
    %vm683 = vweird.f32 %v677
    %vm684 = vweird.f32 %v678
    %vm685 = vmor %vm683, %vm684
    %v686 = vsel %vm685, %v678, %v682
    %v687 = vand.u32 2147483647, %v677
    %vm688 = vcmp.eq.f32.partialorder %v687, 8.507059e+37
    %v689 = vand.u32 %v677, 2147483648
    %v690 = vor.u32 1.1754944e-38, %v689
    %v691 = vsel %vm688, %v690, %v686
    %v692 = vmul.f32 1.0, %v691
    %693 = vst [vmem:[#allocation3] sm:$0x1] %v692
    // Predicated region
    $region46: #{tpu_custom_call.1} parent=1 // pred_check
      _
    $region47: #{tpu_custom_call.1} parent=1 // pred_check_branch
      %695 = sbr.rel (0) target = $region49
    $region48: #{tpu_custom_call.1} parent=1 // pred_region
      %697 = vsyncadd [#allocation4], 0
      %s699 = sshll.u32 [#allocation3], 4
      %s700 = int_to_ptr.vmem [resolvable:$true] %s699
      %s701 = sshll.u32 %s11, 4
      %s702 = int_to_ptr.hbm [resolvable:$true] %s701
      %704 = dma.vmem_to_hbm [thread:$0]  %s700, 16, %s702, [#allocation4]
    $region49: #{tpu_custom_call.1} parent=1 // pred_fallthru
      _
    // Predicated region
    $region50: #{tpu_custom_call.1} parent=1 // pred_check
      _
    $region51: #{tpu_custom_call.1} parent=1 // pred_check_branch
      %706 = sbr.rel (0) target = $region53
    $region52: #{tpu_custom_call.1} parent=1 // pred_region
      %708 = dma.done [#allocation4], 16
    $region53: #{tpu_custom_call.1} parent=1 // pred_fallthru
      _
    %709 = vsyncpa [#allocation4], 1

</llo_original>
